<compile_context>
chip_gen: v5e
topology: v5e:2x2
jax: 0.10.0
libtpu: 0.0.40
codegen_flags: <defaults>
</compile_context>

<pallas_src>
import functools

import jax
import jax.numpy as jnp
from jax.experimental import pallas as pl
from jax.experimental.pallas import tpu as pltpu

LANES = 128
MAX_TILE_ROWS = 4096  # (4096,128) f32 = 2 MiB/buffer; 2 inputs x 2 bufs = 8 MiB pipelined


def _wbce_kernel(x_ref, y_ref, o_ref, acc_ref, *, pos_w, neg_w, inv_total,
                 valid_total, mask_tail, tiles_per_split):
    i = pl.program_id(1)  # row-tile index within this split (innermost, "arbitrary")

    @pl.when(i == 0)
    def _():
        acc_ref[...] = jnp.zeros_like(acc_ref)

    x = x_ref[...].astype(jnp.float32)
    y = y_ref[...].astype(jnp.float32)

    # Numerically stable BCE with logits (VPU + EUP for exp/log1p).
    unweighted = jnp.maximum(x, 0.0) - x * y + jnp.log1p(jnp.exp(-jnp.abs(x)))
    # Exact PyTorch semantics (also correct for soft labels).
    weights = jnp.where(y == 1.0, jnp.float32(pos_w), jnp.float32(neg_w))
    wl = weights * unweighted

    tm, lanes = x.shape  # static block shape; tm is always a multiple of 8
    if mask_tail:
        # Zero the contribution of wrapper-side zero padding (static flag, so
        # the aligned common case pays nothing for this).
        tile_idx = pl.program_id(0) * tiles_per_split + i
        base = tile_idx * (tm * lanes)
        row = jax.lax.broadcasted_iota(jnp.int32, (tm, lanes), 0)
        lane = jax.lax.broadcasted_iota(jnp.int32, (tm, lanes), 1)
        flat = base + row * lanes + lane
        wl = jnp.where(flat < valid_total, wl, 0.0)

    # Fold the tile into a single (8,128) vreg accumulator: the reshape only
    # regroups whole (8,128) vregs (layout-preserving), the sum is plain vreg
    # adds -- no large-VMEM accumulator RMW in steady state.
    acc_ref[...] += jnp.sum(wl.reshape(tm // 8, 8, lanes), axis=0)

    @pl.when(i == pl.num_programs(1) - 1)
    def _():
        # Epilogue: single cross-lane/sublane reduce + 1/N scale per split.
        part = jnp.sum(acc_ref[...]) * jnp.float32(inv_total)
        o_ref[...] = part[None, None]


def _pick_tile_rows(rows8):
    """rows8 is a multiple of 8. Pick the largest tile <= MAX_TILE_ROWS."""
    if rows8 <= MAX_TILE_ROWS:
        return int(rows8)  # single block (full extent)
    for cand in (4096, 2048, 1024, 512):
        if cand <= MAX_TILE_ROWS and rows8 % cand == 0:
            return cand
    # No large exact divisor: keep the big tile and let the wrapper zero-pad
    # the tail (masked in-kernel). Never fall back to one VMEM-busting block.
    return MAX_TILE_ROWS


def _tensorcore_count():
    """Conservative TensorCore-per-chip probe; defaults to 1 if unknown."""
    try:
        info = pltpu.get_tpu_info()
    except Exception:
        return 1
    for name in ("num_cores_per_chip", "tensorcores_per_chip", "num_cores",
                 "core_count", "num_tensorcores"):
        v = getattr(info, name, None)
        if isinstance(v, int) and v > 1:
            return min(int(v), 2)
    return 1


def weighted_bce_loss(outputs, labels, positive_weight=1.0, negative_weight=1.0):
    """Pallas implementation of WeightedBCELoss.forward. Returns a scalar f32."""
    assert outputs.shape == labels.shape
    total = int(outputs.size)

    # Flatten to a lane-dense (rows, 128) slab. Both inputs stay in their native
    # dtype (no wrapper-side casts => no extra HBM pass before the kernel).
    x_flat = outputs.reshape(-1)
    y_flat = labels.reshape(-1)

    rows = -(-total // LANES)           # ceil(total / 128)
    rows8 = -(-rows // 8) * 8           # sublane-align the row count
    tm = _pick_tile_rows(rows8)
    padded_rows = -(-rows8 // tm) * tm
    padded_total = padded_rows * LANES

    pad = padded_total - total
    if pad:
        x_flat = jnp.pad(x_flat, (0, pad))
        y_flat = jnp.pad(y_flat, (0, pad))
    x2d = x_flat.reshape(padded_rows, LANES)
    y2d = y_flat.reshape(padded_rows, LANES)

    num_tiles = padded_rows // tm
    cores = _tensorcore_count()
    if cores > 1 and num_tiles % cores == 0 and num_tiles >= 2 * cores:
        # Genuinely shard the leading axis across TensorCores (v7x-style chips).
        num_splits = cores
        dim_sem = (pltpu.CORE_PARALLEL, pltpu.ARBITRARY)
    else:
        # Single-TC chips (v5e/v6e) or too little work: degenerate size-1 split.
        num_splits = 1
        dim_sem = ("arbitrary", "arbitrary")
    tiles_per_split = num_tiles // num_splits

    kernel = functools.partial(
        _wbce_kernel,
        pos_w=float(positive_weight),
        neg_w=float(negative_weight),
        inv_total=1.0 / float(total),
        valid_total=total,
        mask_tail=bool(pad),
        tiles_per_split=tiles_per_split,
    )

    in_map = lambda s, i, T=tiles_per_split: (s * T + i, 0)

    # Advisory cost hint: bandwidth- and transcendental-heavy, no MXU FLOPs.
    bytes_accessed = (x2d.size * x2d.dtype.itemsize
                      + y2d.size * y2d.dtype.itemsize
                      + num_splits * 4)
    cost = pl.CostEstimate(flops=12 * padded_total,
                           transcendentals=2 * padded_total,
                           bytes_accessed=int(bytes_accessed))

    partials = pl.pallas_call(
        kernel,
        out_shape=jax.ShapeDtypeStruct((num_splits, 1), jnp.float32),
        grid_spec=pltpu.PrefetchScalarGridSpec(
            num_scalar_prefetch=0,
            grid=(num_splits, tiles_per_split),
            in_specs=[
                pl.BlockSpec((tm, LANES), in_map),
                pl.BlockSpec((tm, LANES), in_map),
            ],
            out_specs=pl.BlockSpec((1, 1), lambda s, i: (s, 0)),
            scratch_shapes=[pltpu.VMEM((8, LANES), jnp.float32)],
        ),
        compiler_params=pltpu.CompilerParams(dimension_semantics=dim_sem),
        cost_estimate=cost,
    )(x2d, y2d)

    # Each partial is already divided by the global N, so summing gives the mean.
    return jnp.sum(partials)


def _reference(outputs, labels, pos_w, neg_w):
    x = outputs.astype(jnp.float32)
    y = labels.astype(jnp.float32)
    loss = jnp.maximum(x, 0.0) - x * y + jnp.log1p(jnp.exp(-jnp.abs(x)))
    w = jnp.where(y == 1.0, pos_w, neg_w)
    return jnp.mean(w * loss)


if __name__ == "__main__":
    key = jax.random.PRNGKey(0)
    k1, k2, k3, k4 = jax.random.split(key, 4)

    pos_w, neg_w = 2.0, 0.5

    # Case 1: small NCHW-style shape, lane-aligned (batch=2, channels=4, 16x16).
    shape = (2, 4, 16, 16)
    logits = jax.random.normal(k1, shape, dtype=jnp.float32)
    labels = (jax.random.uniform(k2, shape) > 0.5).astype(jnp.float32)
    loss = weighted_bce_loss(logits, labels, positive_weight=pos_w, negative_weight=neg_w)
    loss = jax.block_until_ready(loss)
    ref = _reference(logits, labels, pos_w, neg_w)
    assert jnp.allclose(loss, ref, rtol=1e-5, atol=1e-6), (loss, ref)

    # Case 2: awkward (non-multiple-of-128) shape exercising the padded/masked path.
    shape2 = (3, 5, 7, 9)
    logits2 = jax.random.normal(k3, shape2, dtype=jnp.float32)
    labels2 = (jax.random.uniform(k4, shape2) > 0.5).astype(jnp.float32)
    loss2 = weighted_bce_loss(logits2, labels2, positive_weight=pos_w, negative_weight=neg_w)
    loss2 = jax.block_until_ready(loss2)
    ref2 = _reference(logits2, labels2, pos_w, neg_w)
    assert jnp.allclose(loss2, ref2, rtol=1e-5, atol=1e-6), (loss2, ref2)

    print("KERNEL_OK")
</pallas_src>

<mosaic_0001>
module attributes {stable_mosaic.version = 11 : i64} {
  func.func @_wbce_kernel(%arg0: i32, %arg1: i32, %arg2: memref<16x128xf32, #tpu.memory_space<vmem>>, %arg3: memref<16x128xf32, #tpu.memory_space<vmem>>, %arg4: memref<1x1xf32, #tpu.memory_space<vmem>>, %arg5: memref<8x128xf32, #tpu.memory_space<vmem>>) attributes {dimension_semantics = [#tpu.dimension_semantics<arbitrary>, #tpu.dimension_semantics<arbitrary>], iteration_bounds = array<i64: 1, 1>, scalar_prefetch = 0 : i64, scratch_operands = 1 : i64, tpu.core_type = #tpu.core_type<tc>, window_params = [{transform_indices = @transform_0, window_bounds = array<i64: 16, 128>}, {transform_indices = @transform_1, window_bounds = array<i64: 16, 128>}, {transform_indices = @transform_2, window_bounds = array<i64: 1, 1>}]} {
    %c0_i32 = arith.constant 0 : i32
    %0 = arith.cmpi eq, %arg1, %c0_i32 : i32
    %1 = arith.extui %0 : i1 to i32
    %c0_i32_0 = arith.constant 0 : i32
    %2 = arith.cmpi ne, %1, %c0_i32_0 : i32
    scf.if %2 {
      %cst_15 = arith.constant 0.000000e+00 : f32
      %29 = vector.broadcast %cst_15 : f32 to vector<8x128xf32>
      %c0_16 = arith.constant 0 : index
      %c0_17 = arith.constant 0 : index
      %30 = vector.load %arg5[%c0_16, %c0_17] : memref<8x128xf32, #tpu.memory_space<vmem>>, vector<8x128xf32>
      tpu.vector_store %arg5[%c0_16, %c0_17], %29 {strides = array<i32>} : memref<8x128xf32, #tpu.memory_space<vmem>>, vector<8x128xf32>,
    } else {
    }
    %c0 = arith.constant 0 : index
    %c0_1 = arith.constant 0 : index
    %3 = vector.load %arg2[%c0, %c0_1] : memref<16x128xf32, #tpu.memory_space<vmem>>, vector<16x128xf32>
    %c0_2 = arith.constant 0 : index
    %c0_3 = arith.constant 0 : index
    %4 = vector.load %arg3[%c0_2, %c0_3] : memref<16x128xf32, #tpu.memory_space<vmem>>, vector<16x128xf32>
    %cst = arith.constant 0.000000e+00 : f32
    %5 = vector.broadcast %cst : f32 to vector<16x128xf32>
    %6 = arith.maximumf %3, %5 : vector<16x128xf32>
    %7 = arith.mulf %3, %4 : vector<16x128xf32>
    %8 = arith.subf %6, %7 : vector<16x128xf32>
    %9 = math.absf %3 : vector<16x128xf32>
    %cst_4 = arith.constant 0.000000e+00 : f32
    %10 = vector.broadcast %cst_4 : f32 to vector<16x128xf32>
    %11 = arith.subf %10, %9 : vector<16x128xf32>
    %12 = math.exp %11 : vector<16x128xf32>
    %13 = math.log1p %12 : vector<16x128xf32>
    %14 = arith.addf %8, %13 : vector<16x128xf32>
    %cst_5 = arith.constant 1.000000e+00 : f32
    %15 = vector.broadcast %cst_5 : f32 to vector<16x128xf32>
    %16 = arith.cmpf oeq, %4, %15 : vector<16x128xf32>
    %cst_6 = arith.constant 2.000000e+00 : f32
    %cst_7 = arith.constant 5.000000e-01 : f32
    %17 = vector.broadcast %cst_6 : f32 to vector<16x128xf32>
    %18 = vector.broadcast %cst_7 : f32 to vector<16x128xf32>
    %19 = arith.select %16, %17, %18 : vector<16x128xi1>, vector<16x128xf32>
    %20 = arith.mulf %19, %14 : vector<16x128xf32>
    %c0_8 = arith.constant 0 : index
    %c0_9 = arith.constant 0 : index
    %21 = vector.load %arg5[%c0_8, %c0_9] : memref<8x128xf32, #tpu.memory_space<vmem>>, vector<8x128xf32>
    %22 = vector.shape_cast %20 : vector<16x128xf32> to vector<2x8x128xf32>
    %cst_10 = arith.constant dense<0.000000e+00> : vector<8x128xf32>
    %23 = vector.multi_reduction <add>, %22, %cst_10 [0] : vector<2x8x128xf32> to vector<8x128xf32>
    %24 = arith.addf %21, %23 : vector<8x128xf32>
    %c0_11 = arith.constant 0 : index
    %c0_12 = arith.constant 0 : index
    %25 = vector.load %arg5[%c0_11, %c0_12] : memref<8x128xf32, #tpu.memory_space<vmem>>, vector<8x128xf32>
    tpu.vector_store %arg5[%c0_11, %c0_12], %24 {strides = array<i32>} : memref<8x128xf32, #tpu.memory_space<vmem>>, vector<8x128xf32>,
    %c0_i32_13 = arith.constant 0 : i32
    %26 = arith.cmpi eq, %arg1, %c0_i32_13 : i32
    %27 = arith.extui %26 : i1 to i32
    %c0_i32_14 = arith.constant 0 : i32
    %28 = arith.cmpi ne, %27, %c0_i32_14 : i32
    scf.if %28 {
      %c0_15 = arith.constant 0 : index
      %c0_16 = arith.constant 0 : index
      %29 = vector.load %arg5[%c0_15, %c0_16] : memref<8x128xf32, #tpu.memory_space<vmem>>, vector<8x128xf32>
      %30 = vector.shape_cast %29 : vector<8x128xf32> to vector<1x8x128xf32>
      %cst_17 = arith.constant dense<0.000000e+00> : vector<1xf32>
      %31 = vector.multi_reduction <add>, %30, %cst_17 [1, 2] : vector<1x8x128xf32> to vector<1xf32>
      %32 = vector.shape_cast %31 : vector<1xf32> to vector<1x1x1xf32>
      %33 = vector.extract %32[0, 0, 0] : f32 from vector<1x1x1xf32>
      %cst_18 = arith.constant 4.8828125E-4 : f32
      %34 = arith.mulf %33, %cst_18 : f32
      %35 = vector.broadcast %34 : f32 to vector<1x1xf32>
      %c0_19 = arith.constant 0 : index
      %c0_20 = arith.constant 0 : index
      %36 = vector.load %arg4[%c0_19, %c0_20] : memref<1x1xf32, #tpu.memory_space<vmem>>, vector<1x1xf32>
      tpu.vector_store %arg4[%c0_19, %c0_20], %35 {strides = array<i32>} : memref<1x1xf32, #tpu.memory_space<vmem>>, vector<1x1xf32>,
    } else {
    }
    return
  }
  func.func @transform_0(%arg0: i32, %arg1: i32) -> (i32, i32) {
    %c1_i32 = arith.constant 1 : i32
    %0 = arith.muli %arg0, %c1_i32 : i32
    %1 = arith.addi %0, %arg1 : i32
    %c0_i32 = arith.constant 0 : i32
    %c0_i32_0 = arith.constant 0 : i32
    return %1, %c0_i32 : i32, i32
  }
  func.func @transform_1(%arg0: i32, %arg1: i32) -> (i32, i32) {
    %c1_i32 = arith.constant 1 : i32
    %0 = arith.muli %arg0, %c1_i32 : i32
    %1 = arith.addi %0, %arg1 : i32
    %c0_i32 = arith.constant 0 : i32
    %c0_i32_0 = arith.constant 0 : i32
    return %1, %c0_i32 : i32, i32
  }
  func.func @transform_2(%arg0: i32, %arg1: i32) -> (i32, i32) {
    %c0_i32 = arith.constant 0 : i32
    %c0_i32_0 = arith.constant 0 : i32
    return %arg0, %c0_i32 : i32, i32
  }
}

</mosaic_0001>

<llo_original>
// kernel: tpu_custom_call.1
$region0: #{tpu_custom_call.1}
  #allocation0 [shape = 'u32[]', space=smem, size = 0x4, offset = 0x4, fixed_abs, tag = 'smem constant byte address 0x4 - core index']
  #allocation1 [shape = 'u32[72,128]{1,0:T(1,128)}', space=vmem, size = 0x9000, scoped, tag = 'internal scratch']
  #allocation2 [shape = 'f32[8,128]{1,0:T(8,128)}', space=vmem, size = 0x1000, scoped, tag = 'scratch operand']
  %s0 = inlined_call_operand.hbm [shape: f32[16,128], index: 0, kind: input, shape index: {}]
  %s1 = inlined_call_operand.hbm [shape: f32[16,128], index: 1, kind: input, shape index: {}]
  %s2 = inlined_call_operand.hbm [shape: f32[1,1], index: 2, kind: output, shape index: {}]
  %s3 = sld [smem:[#allocation0]]
  $region34: #{tpu_custom_call.1} parent=0
    _
  %s5 = ssub.s32 1, %s3
  %s6 = scalar_select 0, %s5, %s3
  $region1: #{tpu_custom_call.1} parent=0
    #allocation3 [shape = 'u8[8192]{0}', space=vmem, size = 0x2000, scoped, tag = 'input window, operand 0, single buffered']
    #allocation4 [shape = 's32[1]{0}', space=sflag, size = 0x4, scoped, tag = 'scoped memory for tpu_custom_call.1']
    #allocation5 [shape = 's32[1]{0}', space=sflag, size = 0x4, scoped, tag = 'scoped memory for tpu_custom_call.1']
    #allocation6 [shape = 'u8[8192]{0}', space=vmem, size = 0x2000, scoped, tag = 'input window, operand 1, single buffered']
    #allocation7 [shape = 's32[1]{0}', space=sflag, size = 0x4, scoped, tag = 'scoped memory for tpu_custom_call.1']
    #allocation8 [shape = 'u8[512]{0}', space=vmem, size = 0x400, scoped, tag = 'output window, operand 0, single buffered']
    %7 = vsyncpa [#allocation4], 0
    %8 = vsyncpa [#allocation7], 0
    %9 = vsyncpa [#allocation5], 0
    // Predicated region
    $region2: #{tpu_custom_call.1} parent=1 // pred_check
      _
    $region3: #{tpu_custom_call.1} parent=1 // pred_check_branch
      %11 = sbr.rel (0) target = $region5
    $region4: #{tpu_custom_call.1} parent=1 // pred_region
      %s12 = sadd.s32 0, 0
      %s13 = smul.u32 2, %s12
      %15 = vsyncadd [#allocation4], 0
      %s16 = smul.addr %s13, 8
      %s17 = scalar_lea.hbm %s0, %s16
      %s18 = sshll.u32 %s17, 4
      %s19 = int_to_ptr.hbm [resolvable:$true] %s18
      %s20 = sshll.u32 [#allocation3], 4
      %s21 = int_to_ptr.vmem [resolvable:$true] %s20
      %26 = dma.hbm_to_vmem [thread:$0]  %s19, 256, %s21, [#allocation4], 128, 128, 8
    $region5: #{tpu_custom_call.1} parent=1 // pred_fallthru
      _
    // Predicated region
    $region6: #{tpu_custom_call.1} parent=1 // pred_check
      _
    $region7: #{tpu_custom_call.1} parent=1 // pred_check_branch
      %28 = sbr.rel (0) target = $region9
    $region8: #{tpu_custom_call.1} parent=1 // pred_region
      %s29 = sadd.s32 0, 0
      %s30 = smul.u32 2, %s29
      %32 = vsyncadd [#allocation7], 0
      %s33 = smul.addr %s30, 8
      %s34 = scalar_lea.hbm %s1, %s33
      %s35 = sshll.u32 %s34, 4
      %s36 = int_to_ptr.hbm [resolvable:$true] %s35
      %s37 = sshll.u32 [#allocation6], 4
      %s38 = int_to_ptr.vmem [resolvable:$true] %s37
      %43 = dma.hbm_to_vmem [thread:$0]  %s36, 256, %s38, [#allocation7], 128, 128, 8
    $region9: #{tpu_custom_call.1} parent=1 // pred_fallthru
      _
    // Predicated region
    $region10: #{tpu_custom_call.1} parent=1 // pred_check
      _
    $region11: #{tpu_custom_call.1} parent=1 // pred_check_branch
      %45 = sbr.rel (0) target = $region13
    $region12: #{tpu_custom_call.1} parent=1 // pred_region
      %47 = dma.done [#allocation4], 256
    $region13: #{tpu_custom_call.1} parent=1 // pred_fallthru
      _
    // Predicated region
    $region14: #{tpu_custom_call.1} parent=1 // pred_check
      _
    $region15: #{tpu_custom_call.1} parent=1 // pred_check_branch
      %49 = sbr.rel (0) target = $region17
    $region16: #{tpu_custom_call.1} parent=1 // pred_region
      %51 = dma.done [#allocation7], 256
    $region17: #{tpu_custom_call.1} parent=1 // pred_fallthru
      _
    %s52 = sadd.s32 0, 0
    %s53 = smul.u32 2, %s52
    %s54 = sadd.s32 0, 0
    %s55 = smul.u32 2, %s54
    %p56 = scmp.eq.s32.totalorder 0, 0
    // Predicated region
    $region18: #{tpu_custom_call.1} parent=1 // pred_check
      %p57 = pneg %p56
    $region19: #{tpu_custom_call.1} parent=1 // pred_check_branch
      %59 = sbr.rel (%p57) target = $region21
    $region20: #{tpu_custom_call.1} parent=1 // pred_region
      %60 = vst [vmem:[#allocation2] sm:$0xff] 0.0
    $region21: #{tpu_custom_call.1} parent=1 // pred_fallthru
      _
    %v61 = vld [vmem:[#allocation3] sm:$0xff]
    %v62 = vld [vmem:[#allocation3 + $0x8] sm:$0xff]
    %v63 = vld [vmem:[#allocation6] sm:$0xff]
    %v64 = vld [vmem:[#allocation6 + $0x8] sm:$0xff]
    %v65 = vmax.f32 %v61, 0.0
    %v66 = vmax.f32 %v62, 0.0
    %v67 = vmul.f32 %v61, %v63
    %v68 = vmul.f32 %v62, %v64
    %v69 = vsub.f32 %v65, %v67
    %v70 = vsub.f32 %v66, %v68
    %v71 = vand.u32 2147483647, %v61
    %v72 = vand.u32 2147483647, %v62
    %v73 = vsub.f32 0.0, %v71
    %v74 = vsub.f32 0.0, %v72
    %v75 = vmul.f32 %v73, 1.442695
    %v76 = vpow.pop %v75
    %v77 = vmul.f32 %v74, 1.442695
    %v78 = vpow.pop %v77
    %v79 = vadd.f32 %v76, 1.0
    %v80 = vlog2.pop %v79
    %v81 = vmul.f32 %v80, 0.6931472
    %v82 = vmul.f32 -0.5, %v76
    %v83 = vadd.f32 %v82, 1.0
    %v84 = vmul.f32 %v83, %v76
    %v85 = vand.u32 2147483647, %v76
    %vm86 = vcmp.lt.f32.partialorder %v85, 0.0004427343
    %v87 = vsel %vm86, %v84, %v81
    %v88 = vadd.f32 %v78, 1.0
    %v89 = vlog2.pop %v88
    %v90 = vmul.f32 %v89, 0.6931472
    %v91 = vmul.f32 -0.5, %v78
    %v92 = vadd.f32 %v91, 1.0
    %v93 = vmul.f32 %v92, %v78
    %v94 = vand.u32 2147483647, %v78
    %vm95 = vcmp.lt.f32.partialorder %v94, 0.0004427343
    %v96 = vsel %vm95, %v93, %v90
    %v97 = vadd.f32 %v69, %v87
    %v98 = vadd.f32 %v70, %v96
    %vm99 = vcmp.eq.f32.partialorder %v63, 1.0
    %vm100 = vcmp.eq.f32.partialorder %v64, 1.0
    %v101 = vsel %vm99, 2.0, 0.5
    %v102 = vsel %vm100, 2.0, 0.5
    %v103 = vmul.f32 %v101, %v97
    %v104 = vmul.f32 %v102, %v98
    %v105 = vld [vmem:[#allocation2] sm:$0xff]
    %v106 = vadd.f32 %v103, %v104
    %v107 = vadd.f32 %v105, %v106
    %108 = vst [vmem:[#allocation2] sm:$0xff] %v107
    // Predicated region
    $region22: #{tpu_custom_call.1} parent=1 // pred_check
      %p109 = pneg %p56
    $region23: #{tpu_custom_call.1} parent=1 // pred_check_branch
      %111 = sbr.rel (%p109) target = $region25
    $region24: #{tpu_custom_call.1} parent=1 // pred_region
      %v112 = vld [vmem:[#allocation2] sm:$0xff]
      %113 = vadd.xlane.f32.xlu0 %v112
      %v114 = vpop.xlane.xlu0 %113
      %v115 = vrot.slane %v114, 4
      %v116 = vadd.f32 %v114, %v115
      %v117 = vrot.slane %v116, 2
      %v118 = vadd.f32 %v116, %v117
      %v119 = vrot.slane %v118, 1
      %v120 = vadd.f32 %v118, %v119
      %s121 = vtos %v120
      %s122 = smul.f32 %s121, 0.00048828125
      %v123 = vstv %s122
      %vm124 = vcmask 0
      %125 = vst.msk [vmem:[#allocation8] sm:$0x1] %vm124, %v123
    $region25: #{tpu_custom_call.1} parent=1 // pred_fallthru
      _
    // Predicated region
    $region26: #{tpu_custom_call.1} parent=1 // pred_check
      _
    $region27: #{tpu_custom_call.1} parent=1 // pred_check_branch
      %127 = sbr.rel (0) target = $region29
    $region28: #{tpu_custom_call.1} parent=1 // pred_region
      %129 = vsyncadd [#allocation5], 0
      %s131 = sshll.u32 [#allocation8], 4
      %s132 = int_to_ptr.vmem [resolvable:$true] %s131
      %s133 = sshll.u32 %s2, 4
      %s134 = int_to_ptr.hbm [resolvable:$true] %s133
      %136 = dma.vmem_to_hbm [thread:$0]  %s132, 16, %s134, [#allocation5]
    $region29: #{tpu_custom_call.1} parent=1 // pred_fallthru
      _
    // Predicated region
    $region30: #{tpu_custom_call.1} parent=1 // pred_check
      _
    $region31: #{tpu_custom_call.1} parent=1 // pred_check_branch
      %138 = sbr.rel (0) target = $region33
    $region32: #{tpu_custom_call.1} parent=1 // pred_region
      %140 = dma.done [#allocation5], 16
    $region33: #{tpu_custom_call.1} parent=1 // pred_fallthru
      _
    %141 = vsyncpa [#allocation4], 1
    %142 = vsyncpa [#allocation7], 1
    %143 = vsyncpa [#allocation5], 1

</llo_original>
